<compile_context>
chip_gen: v7x
topology: tpu7x:2x2x1
jax: 0.10.0
libtpu: 0.0.40
codegen_flags: <defaults>
</compile_context>

<pallas_src>
import functools

import jax
import jax.numpy as jnp
from jax.experimental import pallas as pl
from jax.experimental.pallas import tpu as pltpu

IN_DIM = 352
HID = 100
OUT_DIM = 2

IN_PAD = 384    # 3 full 128-lane tiles
HID_PAD = 128   # 1 full 128-lane tile

DEFAULT_TILE_M = 1024  # rows per grid step; bf16 x tile = 768 KiB (x2 buffers)
                       # + ~130 KiB weights + f32 intermediates: fits v5e/v6e/v7x
                       # default scoped VMEM with plenty of headroom.


def _mlp_kernel(x_ref, w1_ref, b1_ref, w2_ref, b2_ref, w3_ref, b3_ref, o_ref):
    # Fused 3-layer MLP on one (TILE_M, 384) bf16 activation tile.
    x = x_ref[...]
    h1 = jnp.dot(x, w1_ref[...], preferred_element_type=jnp.float32) + b1_ref[...]
    h1 = jnp.maximum(h1, 0.0).astype(jnp.bfloat16)
    h2 = jnp.dot(h1, w2_ref[...], preferred_element_type=jnp.float32) + b2_ref[...]
    h2 = jnp.maximum(h2, 0.0).astype(jnp.bfloat16)
    out = jnp.dot(h2, w3_ref[...], preferred_element_type=jnp.float32) + b3_ref[...]
    o_ref[...] = out.astype(o_ref.dtype)


def init_params(key):
    """PyTorch-default-style init (uniform +/- 1/sqrt(fan_in)), weights stored
    as (in_features, out_features), biases as (1, out_features)."""
    def linear(k, fan_in, fan_out):
        kw, kb = jax.random.split(k)
        bound = 1.0 / jnp.sqrt(fan_in)
        w = jax.random.uniform(kw, (fan_in, fan_out), jnp.float32, -bound, bound)
        b = jax.random.uniform(kb, (1, fan_out), jnp.float32, -bound, bound)
        return w, b

    k1, k2, k3 = jax.random.split(key, 3)
    w1, b1 = linear(k1, IN_DIM, HID)
    w2, b2 = linear(k2, HID, HID)
    w3, b3 = linear(k3, HID, OUT_DIM)
    return (w1, b1, w2, b2, w3, b3)


def prepare_params(params):
    """One-time: zero-pad to lane-aligned shapes and cast weights to bf16.
    Biases stay f32 (added after the f32 accumulate)."""
    w1, b1, w2, b2, w3, b3 = params
    w1p = (jnp.zeros((IN_PAD, HID_PAD), jnp.float32)
           .at[:IN_DIM, :HID].set(w1).astype(jnp.bfloat16))
    w2p = (jnp.zeros((HID_PAD, HID_PAD), jnp.float32)
           .at[:HID, :HID].set(w2).astype(jnp.bfloat16))
    w3p = (jnp.zeros((HID_PAD, OUT_DIM), jnp.float32)
           .at[:HID, :].set(w3).astype(jnp.bfloat16))
    b1p = jnp.zeros((1, HID_PAD), jnp.float32).at[:, :HID].set(b1)
    b2p = jnp.zeros((1, HID_PAD), jnp.float32).at[:, :HID].set(b2)
    b3p = b3.astype(jnp.float32)
    return (w1p, b1p, w2p, b2p, w3p, b3p)


@functools.partial(jax.jit, static_argnames=("tile_m",))
def peng_player_forward(x, prepared_params, tile_m=DEFAULT_TILE_M):
    """x: (B, 352) float32 -> (B, 2) float32."""
    w1, b1, w2, b2, w3, b3 = prepared_params
    B = x.shape[0]

    # Batch tile: multiple of 8 sublanes, clamped so tiny batches use one step.
    tm = min(tile_m, max(8, ((B + 7) // 8) * 8))
    b_pad = ((B + tm - 1) // tm) * tm
    grid = (b_pad // tm,)

    # Lane-align features (352 -> 384), pad batch to a tile multiple, cast to
    # bf16 for the streaming activation tensor.
    xp = jnp.zeros((b_pad, IN_PAD), jnp.bfloat16)
    xp = xp.at[:B, :IN_DIM].set(x.astype(jnp.bfloat16))

    def resident(a):  # weights/biases: same block every grid step -> stay in VMEM
        return pl.BlockSpec(a.shape, lambda i: (0,) * a.ndim)

    flops = 2 * b_pad * (IN_PAD * HID_PAD + HID_PAD * HID_PAD + HID_PAD * OUT_DIM)
    bytes_accessed = (b_pad * IN_PAD * 2                                   # x (bf16)
                      + (IN_PAD * HID_PAD + HID_PAD * HID_PAD
                         + HID_PAD * OUT_DIM) * 2                          # weights (bf16)
                      + (2 * HID_PAD + OUT_DIM) * 4                        # biases (f32)
                      + b_pad * OUT_DIM * 4)                               # output (f32)

    out = pl.pallas_call(
        _mlp_kernel,
        out_shape=jax.ShapeDtypeStruct((b_pad, OUT_DIM), jnp.float32),
        grid=grid,
        in_specs=[pl.BlockSpec((tm, IN_PAD), lambda i: (i, 0)),
                  resident(w1), resident(b1),
                  resident(w2), resident(b2),
                  resident(w3), resident(b3)],
        out_specs=pl.BlockSpec((tm, OUT_DIM), lambda i: (i, 0)),
        compiler_params=pltpu.CompilerParams(
            dimension_semantics=("parallel",)),
        cost_estimate=pl.CostEstimate(
            flops=flops, transcendentals=0, bytes_accessed=bytes_accessed),
    )(xp, w1, b1, w2, b2, w3, b3)

    return out[:B]


if __name__ == "__main__":
    key = jax.random.PRNGKey(0)
    k_params, k_x = jax.random.split(key)

    params = init_params(k_params)
    prepared = prepare_params(params)

    B = 8
    x = jax.random.normal(k_x, (B, IN_DIM), jnp.float32)

    out = peng_player_forward(x, prepared)
    out = jax.block_until_ready(out)

    # Reference in plain f32 JAX (same math as the PyTorch forward).
    w1, b1, w2, b2, w3, b3 = params
    h1 = jnp.maximum(x @ w1 + b1, 0.0)
    h2 = jnp.maximum(h1 @ w2 + b2, 0.0)
    ref = h2 @ w3 + b3

    assert out.shape == (B, OUT_DIM)
    # bf16 activation/weight path -> loosened tolerance vs. f32 reference.
    assert jnp.allclose(out, ref, atol=2e-2, rtol=2e-2), (
        f"max abs err {jnp.max(jnp.abs(out - ref))}")

    print("KERNEL_OK")
</pallas_src>

<mosaic_0001>
module attributes {stable_mosaic.version = 11 : i64} {
  func.func @_mlp_kernel(%arg0: i32, %arg1: memref<8x384xbf16, #tpu.memory_space<vmem>>, %arg2: memref<384x128xbf16, #tpu.memory_space<vmem>>, %arg3: memref<1x128xf32, #tpu.memory_space<vmem>>, %arg4: memref<128x128xbf16, #tpu.memory_space<vmem>>, %arg5: memref<1x128xf32, #tpu.memory_space<vmem>>, %arg6: memref<128x2xbf16, #tpu.memory_space<vmem>>, %arg7: memref<1x2xf32, #tpu.memory_space<vmem>>, %arg8: memref<8x2xf32, #tpu.memory_space<vmem>>) attributes {dimension_semantics = [#tpu.dimension_semantics<parallel>], iteration_bounds = array<i64: 1>, scalar_prefetch = 0 : i64, scratch_operands = 0 : i64, tpu.core_type = #tpu.core_type<tc>, window_params = [{transform_indices = @transform_0, window_bounds = array<i64: 8, 384>}, {pipeline_mode = #tpu.pipeline_mode<synchronous>, transform_indices = @transform_1, window_bounds = array<i64: 384, 128>}, {pipeline_mode = #tpu.pipeline_mode<synchronous>, transform_indices = @transform_2, window_bounds = array<i64: 1, 128>}, {pipeline_mode = #tpu.pipeline_mode<synchronous>, transform_indices = @transform_3, window_bounds = array<i64: 128, 128>}, {pipeline_mode = #tpu.pipeline_mode<synchronous>, transform_indices = @transform_4, window_bounds = array<i64: 1, 128>}, {pipeline_mode = #tpu.pipeline_mode<synchronous>, transform_indices = @transform_5, window_bounds = array<i64: 128, 2>}, {pipeline_mode = #tpu.pipeline_mode<synchronous>, transform_indices = @transform_6, window_bounds = array<i64: 1, 2>}, {transform_indices = @transform_7, window_bounds = array<i64: 8, 2>}]} {
    %c0 = arith.constant 0 : index
    %c0_0 = arith.constant 0 : index
    %0 = vector.load %arg1[%c0, %c0_0] : memref<8x384xbf16, #tpu.memory_space<vmem>>, vector<8x384xbf16>
    %c0_1 = arith.constant 0 : index
    %c0_2 = arith.constant 0 : index
    %1 = vector.load %arg2[%c0_1, %c0_2] : memref<384x128xbf16, #tpu.memory_space<vmem>>, vector<384x128xbf16>
    %cst = arith.constant dense<0.000000e+00> : vector<8x128xf32>
    %2 = tpu.matmul %0, %1, %cst {dimension_numbers = #tpu.dot_dimension_numbers<[1], [0], [0], [1], [0, 0, 1, 1], [], []>} : vector<8x384xbf16>, vector<384x128xbf16>, vector<8x128xf32> -> vector<8x128xf32>
    %c0_3 = arith.constant 0 : index
    %c0_4 = arith.constant 0 : index
    %3 = vector.load %arg3[%c0_3, %c0_4] : memref<1x128xf32, #tpu.memory_space<vmem>>, vector<1x128xf32>
    %4 = vector.broadcast %3 : vector<1x128xf32> to vector<8x128xf32>
    %5 = arith.addf %2, %4 : vector<8x128xf32>
    %cst_5 = arith.constant 0.000000e+00 : f32
    %6 = vector.broadcast %cst_5 : f32 to vector<8x128xf32>
    %7 = arith.maximumf %5, %6 : vector<8x128xf32>
    %8 = arith.truncf %7 : vector<8x128xf32> to vector<8x128xbf16>
    %c0_6 = arith.constant 0 : index
    %c0_7 = arith.constant 0 : index
    %9 = vector.load %arg4[%c0_6, %c0_7] : memref<128x128xbf16, #tpu.memory_space<vmem>>, vector<128x128xbf16>
    %cst_8 = arith.constant dense<0.000000e+00> : vector<8x128xf32>
    %10 = tpu.matmul %8, %9, %cst_8 {dimension_numbers = #tpu.dot_dimension_numbers<[1], [0], [0], [1], [0, 0, 1, 1], [], []>} : vector<8x128xbf16>, vector<128x128xbf16>, vector<8x128xf32> -> vector<8x128xf32>
    %c0_9 = arith.constant 0 : index
    %c0_10 = arith.constant 0 : index
    %11 = vector.load %arg5[%c0_9, %c0_10] : memref<1x128xf32, #tpu.memory_space<vmem>>, vector<1x128xf32>
    %12 = vector.broadcast %11 : vector<1x128xf32> to vector<8x128xf32>
    %13 = arith.addf %10, %12 : vector<8x128xf32>
    %cst_11 = arith.constant 0.000000e+00 : f32
    %14 = vector.broadcast %cst_11 : f32 to vector<8x128xf32>
    %15 = arith.maximumf %13, %14 : vector<8x128xf32>
    %16 = arith.truncf %15 : vector<8x128xf32> to vector<8x128xbf16>
    %c0_12 = arith.constant 0 : index
    %c0_13 = arith.constant 0 : index
    %17 = vector.load %arg6[%c0_12, %c0_13] : memref<128x2xbf16, #tpu.memory_space<vmem>>, vector<128x2xbf16>
    %cst_14 = arith.constant dense<0.000000e+00> : vector<8x2xf32>
    %18 = tpu.matmul %16, %17, %cst_14 {dimension_numbers = #tpu.dot_dimension_numbers<[1], [0], [0], [1], [0, 0, 1, 1], [], []>} : vector<8x128xbf16>, vector<128x2xbf16>, vector<8x2xf32> -> vector<8x2xf32>
    %c0_15 = arith.constant 0 : index
    %c0_16 = arith.constant 0 : index
    %19 = vector.load %arg7[%c0_15, %c0_16] : memref<1x2xf32, #tpu.memory_space<vmem>>, vector<1x2xf32>
    %20 = vector.broadcast %19 : vector<1x2xf32> to vector<8x2xf32>
    %21 = arith.addf %18, %20 : vector<8x2xf32>
    %c0_17 = arith.constant 0 : index
    %c0_18 = arith.constant 0 : index
    %22 = vector.load %arg8[%c0_17, %c0_18] : memref<8x2xf32, #tpu.memory_space<vmem>>, vector<8x2xf32>
    tpu.vector_store %arg8[%c0_17, %c0_18], %21 {strides = array<i32>} : memref<8x2xf32, #tpu.memory_space<vmem>>, vector<8x2xf32>,
    return
  }
  func.func @transform_0(%arg0: i32) -> (i32, i32) {
    %c0_i32 = arith.constant 0 : i32
    %c0_i32_0 = arith.constant 0 : i32
    return %arg0, %c0_i32 : i32, i32
  }
  func.func @transform_1(%arg0: i32) -> (i32, i32) {
    %c0_i32 = arith.constant 0 : i32
    %c0_i32_0 = arith.constant 0 : i32
    %c0_i32_1 = arith.constant 0 : i32
    return %c0_i32, %c0_i32_0 : i32, i32
  }
  func.func @transform_2(%arg0: i32) -> (i32, i32) {
    %c0_i32 = arith.constant 0 : i32
    %c0_i32_0 = arith.constant 0 : i32
    %c0_i32_1 = arith.constant 0 : i32
    return %c0_i32, %c0_i32_0 : i32, i32
  }
  func.func @transform_3(%arg0: i32) -> (i32, i32) {
    %c0_i32 = arith.constant 0 : i32
    %c0_i32_0 = arith.constant 0 : i32
    %c0_i32_1 = arith.constant 0 : i32
    return %c0_i32, %c0_i32_0 : i32, i32
  }
  func.func @transform_4(%arg0: i32) -> (i32, i32) {
    %c0_i32 = arith.constant 0 : i32
    %c0_i32_0 = arith.constant 0 : i32
    %c0_i32_1 = arith.constant 0 : i32
    return %c0_i32, %c0_i32_0 : i32, i32
  }
  func.func @transform_5(%arg0: i32) -> (i32, i32) {
    %c0_i32 = arith.constant 0 : i32
    %c0_i32_0 = arith.constant 0 : i32
    %c0_i32_1 = arith.constant 0 : i32
    return %c0_i32, %c0_i32_0 : i32, i32
  }
  func.func @transform_6(%arg0: i32) -> (i32, i32) {
    %c0_i32 = arith.constant 0 : i32
    %c0_i32_0 = arith.constant 0 : i32
    %c0_i32_1 = arith.constant 0 : i32
    return %c0_i32, %c0_i32_0 : i32, i32
  }
  func.func @transform_7(%arg0: i32) -> (i32, i32) {
    %c0_i32 = arith.constant 0 : i32
    %c0_i32_0 = arith.constant 0 : i32
    return %arg0, %c0_i32 : i32, i32
  }
}

</mosaic_0001>

<llo_original>
// kernel: peng_player_forward.1
$region0: #{peng_player_forward.1}
  #allocation0 [shape = 'u32[]', space=smem, size = 0x4, offset = 0x4, fixed_abs, tag = 'smem constant byte address 0x4 - core index']
  #allocation1 [shape = 'u32[144,128]{1,0:T(1,128)}', space=vmem, size = 0x12000, scoped, tag = 'internal scratch']
  %s0 = inlined_call_operand.vmem [shape: bf16[8,384], index: 0, kind: input, shape index: {}]
  %s1 = inlined_call_operand.hbm [shape: bf16[384,128], index: 1, kind: input, shape index: {}]
  %s2 = inlined_call_operand.vmem [shape: f32[1,128], index: 2, kind: input, shape index: {}]
  %s3 = inlined_call_operand.vmem [shape: bf16[128,128], index: 3, kind: input, shape index: {}]
  %s4 = inlined_call_operand.vmem [shape: f32[1,128], index: 4, kind: input, shape index: {}]
  %s5 = inlined_call_operand.vmem [shape: bf16[128,2], index: 5, kind: input, shape index: {}]
  %s6 = inlined_call_operand.vmem [shape: f32[1,2], index: 6, kind: input, shape index: {}]
  %s7 = inlined_call_operand.vmem [shape: f32[8,2], index: 7, kind: output, shape index: {}]
  %s8 = sld [smem:[#allocation0]]
  $region42: #{peng_player_forward.1} parent=0
    _
  %s10 = ssub.s32 1, %s8
  %s11 = scalar_select 0, %s10, %s8
  $region1: #{peng_player_forward.1} parent=0
    #allocation2 [shape = 'u8[98304]{0}', space=vmem, size = 0x18000, scoped, tag = 'input window, operand 1, single buffered']
    #allocation3 [shape = 's32[1]{0}', space=sflag, size = 0x4, scoped, tag = 'scoped memory for peng_player_forward.1']
    %12 = vsyncpa [#allocation3], 0
    // Predicated region
    $region2: #{peng_player_forward.1} parent=1 // pred_check
      _
    $region3: #{peng_player_forward.1} parent=1 // pred_check_branch
      %14 = sbr.rel (0) target = $region5
    $region4: #{peng_player_forward.1} parent=1 // pred_region
      _
    $region5: #{peng_player_forward.1} parent=1 // pred_fallthru
      _
    // Predicated region
    $region6: #{peng_player_forward.1} parent=1 // pred_check
      _
    $region7: #{peng_player_forward.1} parent=1 // pred_check_branch
      %16 = sbr.rel (0) target = $region9
    $region8: #{peng_player_forward.1} parent=1 // pred_region
      %s18 = ssub.s32 3072, 3072
      %19 = vsyncadd [#allocation3], %s18
      %s20 = sshll.u32 [#allocation2], 4
      %s21 = int_to_ptr.vmem [resolvable:$true] %s20
      %26 = dma.hbm_to_vmem [thread:$0]  %s1, 3072, %s21, [#allocation3], 64, 64, 4
    $region9: #{peng_player_forward.1} parent=1 // pred_fallthru
      _
    // Predicated region
    $region10: #{peng_player_forward.1} parent=1 // pred_check
      _
    $region11: #{peng_player_forward.1} parent=1 // pred_check_branch
      %28 = sbr.rel (0) target = $region13
    $region12: #{peng_player_forward.1} parent=1 // pred_region
      _
    $region13: #{peng_player_forward.1} parent=1 // pred_fallthru
      _
    // Predicated region
    $region14: #{peng_player_forward.1} parent=1 // pred_check
      _
    $region15: #{peng_player_forward.1} parent=1 // pred_check_branch
      %30 = sbr.rel (0) target = $region17
    $region16: #{peng_player_forward.1} parent=1 // pred_region
      _
    $region17: #{peng_player_forward.1} parent=1 // pred_fallthru
      _
    // Predicated region
    $region18: #{peng_player_forward.1} parent=1 // pred_check
      _
    $region19: #{peng_player_forward.1} parent=1 // pred_check_branch
      %32 = sbr.rel (0) target = $region21
    $region20: #{peng_player_forward.1} parent=1 // pred_region
      _
    $region21: #{peng_player_forward.1} parent=1 // pred_fallthru
      _
    // Predicated region
    $region22: #{peng_player_forward.1} parent=1 // pred_check
      _
    $region23: #{peng_player_forward.1} parent=1 // pred_check_branch
      %34 = sbr.rel (0) target = $region25
    $region24: #{peng_player_forward.1} parent=1 // pred_region
      _
    $region25: #{peng_player_forward.1} parent=1 // pred_fallthru
      _
    // Predicated region
    $region26: #{peng_player_forward.1} parent=1 // pred_check
      _
    $region27: #{peng_player_forward.1} parent=1 // pred_check_branch
      %36 = sbr.rel (0) target = $region29
    $region28: #{peng_player_forward.1} parent=1 // pred_region
      _
    $region29: #{peng_player_forward.1} parent=1 // pred_fallthru
      _
    // Predicated region
    $region30: #{peng_player_forward.1} parent=1 // pred_check
      _
    $region31: #{peng_player_forward.1} parent=1 // pred_check_branch
      %38 = sbr.rel (0) target = $region33
    $region32: #{peng_player_forward.1} parent=1 // pred_region
      %39 = dma.done [#allocation3], 3072
    $region33: #{peng_player_forward.1} parent=1 // pred_fallthru
      _
    %v41 = vld [vmem:[%s0] sm:$0xff]
    %v42 = vld [vmem:[%s0 + $0x8] sm:$0xf]
    %v43 = vld [vmem:[#allocation2] sm:$0xf]
    %v44 = vld [vmem:[#allocation2 + $0x4] sm:$0xf]
    %v45 = vld [vmem:[#allocation2 + $0x8] sm:$0xf]
    %v46 = vld [vmem:[#allocation2 + $0xc] sm:$0xf]
    %v47 = vld [vmem:[#allocation2 + $0x10] sm:$0xf]
    %v48 = vld [vmem:[#allocation2 + $0x14] sm:$0xf]
    %v49 = vld [vmem:[#allocation2 + $0x18] sm:$0xf]
    %v50 = vld [vmem:[#allocation2 + $0x1c] sm:$0xf]
    %v51 = vld [vmem:[#allocation2 + $0x20] sm:$0xf]
    %v52 = vld [vmem:[#allocation2 + $0x24] sm:$0xf]
    %v53 = vld [vmem:[#allocation2 + $0x28] sm:$0xf]
    %v54 = vld [vmem:[#allocation2 + $0x2c] sm:$0xf]
    %v55 = vld [vmem:[#allocation2 + $0x30] sm:$0xf]
    %v56 = vld [vmem:[#allocation2 + $0x34] sm:$0xf]
    %v57 = vld [vmem:[#allocation2 + $0x38] sm:$0xf]
    %v58 = vld [vmem:[#allocation2 + $0x3c] sm:$0xf]
    %v59 = vld [vmem:[#allocation2 + $0x40] sm:$0xf]
    %v60 = vld [vmem:[#allocation2 + $0x44] sm:$0xf]
    %v61 = vld [vmem:[#allocation2 + $0x48] sm:$0xf]
    %v62 = vld [vmem:[#allocation2 + $0x4c] sm:$0xf]
    %v63 = vld [vmem:[#allocation2 + $0x50] sm:$0xf]
    %v64 = vld [vmem:[#allocation2 + $0x54] sm:$0xf]
    %v65 = vld [vmem:[#allocation2 + $0x58] sm:$0xf]
    %v66 = vld [vmem:[#allocation2 + $0x5c] sm:$0xf]
    %v67 = vld [vmem:[#allocation2 + $0x60] sm:$0xf]
    %v68 = vld [vmem:[#allocation2 + $0x64] sm:$0xf]
    %v69 = vld [vmem:[#allocation2 + $0x68] sm:$0xf]
    %v70 = vld [vmem:[#allocation2 + $0x6c] sm:$0xf]
    %v71 = vld [vmem:[#allocation2 + $0x70] sm:$0xf]
    %v72 = vld [vmem:[#allocation2 + $0x74] sm:$0xf]
    %v73 = vld [vmem:[#allocation2 + $0x78] sm:$0xf]
    %v74 = vld [vmem:[#allocation2 + $0x7c] sm:$0xf]
    %v75 = vld [vmem:[#allocation2 + $0x80] sm:$0xf]
    %v76 = vld [vmem:[#allocation2 + $0x84] sm:$0xf]
    %v77 = vld [vmem:[#allocation2 + $0x88] sm:$0xf]
    %v78 = vld [vmem:[#allocation2 + $0x8c] sm:$0xf]
    %v79 = vld [vmem:[#allocation2 + $0x90] sm:$0xf]
    %v80 = vld [vmem:[#allocation2 + $0x94] sm:$0xf]
    %v81 = vld [vmem:[#allocation2 + $0x98] sm:$0xf]
    %v82 = vld [vmem:[#allocation2 + $0x9c] sm:$0xf]
    %v83 = vld [vmem:[#allocation2 + $0xa0] sm:$0xf]
    %v84 = vld [vmem:[#allocation2 + $0xa4] sm:$0xf]
    %v85 = vld [vmem:[#allocation2 + $0xa8] sm:$0xf]
    %v86 = vld [vmem:[#allocation2 + $0xac] sm:$0xf]
    %v87 = vld [vmem:[#allocation2 + $0xb0] sm:$0xf]
    %v88 = vld [vmem:[#allocation2 + $0xb4] sm:$0xf]
    %v89 = vld [vmem:[#allocation2 + $0xb8] sm:$0xf]
    %v90 = vld [vmem:[#allocation2 + $0xbc] sm:$0xf]
    %v91 = vld [vmem:[%s2] sm:$0x1]
    %v93 = vlaneseq
    %v94 = vshrl.u32 %v93, 7
    %v95 = vsub.s32 0, %v94
    %v96 = vrot.slane %v91, %v95
    %v100 = vunpack.c.l.b16 %v41
    %v101 = vunpack.c.h.b16 %v41
    %v102 = vunpack.c.l.b16 %v42
    %v103 = vpack.c.b16 %v100, %v100
    %v104 = vpack.c.b16 %v101, %v101
    %v105 = vpack.c.b16 %v102, %v102
    %v157 = vunpack.c.l.b16 %v43
    %v158 = vunpack.c.l.b16 %v44
    %v159 = vunpack.c.l.b16 %v45
    %v160 = vunpack.c.l.b16 %v46
    %v161 = vunpack.c.l.b16 %v47
    %v162 = vunpack.c.l.b16 %v48
    %v163 = vunpack.c.l.b16 %v49
    %v164 = vunpack.c.l.b16 %v50
    %v165 = vunpack.c.l.b16 %v51
    %v166 = vunpack.c.l.b16 %v52
    %v167 = vunpack.c.l.b16 %v53
    %v168 = vunpack.c.l.b16 %v54
    %v169 = vunpack.c.l.b16 %v55
    %v170 = vunpack.c.l.b16 %v56
    %v171 = vunpack.c.l.b16 %v57
    %v172 = vunpack.c.l.b16 %v58
    %v173 = vunpack.c.l.b16 %v59
    %v174 = vunpack.c.l.b16 %v60
    %v175 = vunpack.c.l.b16 %v61
    %v176 = vunpack.c.l.b16 %v62
    %v177 = vunpack.c.l.b16 %v63
    %v178 = vunpack.c.l.b16 %v64
    %v179 = vunpack.c.l.b16 %v65
    %v180 = vunpack.c.l.b16 %v66
    %v181 = vunpack.c.l.b16 %v67
    %v182 = vunpack.c.l.b16 %v68
    %v183 = vunpack.c.l.b16 %v69
    %v184 = vunpack.c.l.b16 %v70
    %v185 = vunpack.c.l.b16 %v71
    %v186 = vunpack.c.l.b16 %v72
    %v187 = vunpack.c.l.b16 %v73
    %v188 = vunpack.c.l.b16 %v74
    %v189 = vunpack.c.l.b16 %v75
    %v190 = vunpack.c.l.b16 %v76
    %v191 = vunpack.c.l.b16 %v77
    %v192 = vunpack.c.l.b16 %v78
    %v193 = vunpack.c.l.b16 %v79
    %v194 = vunpack.c.l.b16 %v80
    %v195 = vunpack.c.l.b16 %v81
    %v196 = vunpack.c.l.b16 %v82
    %v197 = vunpack.c.l.b16 %v83
    %v198 = vunpack.c.l.b16 %v84
    %v199 = vunpack.c.l.b16 %v85
    %v200 = vunpack.c.l.b16 %v86
    %v201 = vunpack.c.l.b16 %v87
    %v202 = vunpack.c.l.b16 %v88
    %v203 = vunpack.c.l.b16 %v89
    %v204 = vunpack.c.l.b16 %v90
    %v205 = vpack.c.b16 %v158, %v157
    %v206 = vpack.c.b16 %v160, %v159
    %v207 = vpack.c.b16 %v162, %v161
    %v208 = vpack.c.b16 %v164, %v163
    %v209 = vpack.c.b16 %v166, %v165
    %v210 = vpack.c.b16 %v168, %v167
    %v211 = vpack.c.b16 %v170, %v169
    %v212 = vpack.c.b16 %v172, %v171
    %v213 = vpack.c.b16 %v174, %v173
    %v214 = vpack.c.b16 %v176, %v175
    %v215 = vpack.c.b16 %v178, %v177
    %v216 = vpack.c.b16 %v180, %v179
    %v217 = vpack.c.b16 %v182, %v181
    %v218 = vpack.c.b16 %v184, %v183
    %v219 = vpack.c.b16 %v186, %v185
    %v220 = vpack.c.b16 %v188, %v187
    %v221 = vpack.c.b16 %v190, %v189
    %v222 = vpack.c.b16 %v192, %v191
    %v223 = vpack.c.b16 %v194, %v193
    %v224 = vpack.c.b16 %v196, %v195
    %v225 = vpack.c.b16 %v198, %v197
    %v226 = vpack.c.b16 %v200, %v199
    %v227 = vpack.c.b16 %v202, %v201
    %v228 = vpack.c.b16 %v204, %v203
    %253 = vmatprep.subr.bf16.mxu0 0
    %254 = vmatpush1.bf16.msra.mxu0 %v205
    %255 = vmatprep.subr.bf16.mxu0 0
    %256 = vmatpush1.bf16.msra.mxu0 %v206
    %257 = vmatprep.subr.bf16.mxu0 0
    %258 = vmatpush1.bf16.msra.mxu0 %v207
    %259 = vmatprep.subr.bf16.mxu0 0
    %260 = vmatpush1.bf16.msra.mxu0 %v208
    %261 = vmatprep.subr.bf16.mxu0 0
    %262 = vmatpush1.bf16.msra.mxu0 %v209
    %263 = vmatprep.subr.bf16.mxu0 0
    %264 = vmatpush1.bf16.msra.mxu0 %v210
    %265 = vmatprep.subr.bf16.mxu0 0
    %266 = vmatpush1.bf16.msra.mxu0 %v211
    %267 = vmatprep.subr.bf16.mxu0 0
    %268 = vmatpush1.bf16.msra.mxu0 %v212
    %269 = vmatprep.subr.bf16.mxu0 0
    %270 = vmatpush1.bf16.msra.mxu0 %v213
    %271 = vmatprep.subr.bf16.mxu0 0
    %272 = vmatpush1.bf16.msra.mxu0 %v214
    %273 = vmatprep.subr.bf16.mxu0 0
    %274 = vmatpush1.bf16.msra.mxu0 %v215
    %275 = vmatprep.subr.bf16.mxu0 0
    %276 = vmatpush1.bf16.msra.mxu0 %v216
    %277 = vmatprep.subr.bf16.mxu0 0
    %278 = vmatpush1.bf16.msra.mxu0 %v217
    %279 = vmatprep.subr.bf16.mxu0 0
    %280 = vmatpush1.bf16.msra.mxu0 %v218
    %281 = vmatprep.subr.bf16.mxu0 0
    %282 = vmatpush1.bf16.msra.mxu0 %v219
    %283 = vmatprep.subr.bf16.mxu0 0
    %284 = vmatpush1.bf16.msra.mxu0 %v220
    %285 = vmatprep.mubr.bf16.mxu0 %v104
    %286 = vmatmul.mubr.bf16.gmra.mrb[0].mxu0 %v103
    %v287 = vpop.f32.mrb[0].mxu0
    %v288 = vadd.f32 %v96, %v287
    %v289 = vpop.f32.mrb[0].mxu0
    %v290 = vpop.f32.mrb[0].mxu0
    %v291 = vpop.f32.mrb[0].mxu0
    %292 = vdwg.mxu0
    %293 = vmatprep.subr.bf16.mxu0 0
    %294 = vmatpush1.bf16.msra.mxu0 %v221
    %295 = vmatprep.subr.bf16.mxu0 0
    %296 = vmatpush1.bf16.msra.mxu0 %v222
    %297 = vmatprep.subr.bf16.mxu0 0
    %298 = vmatpush1.bf16.msra.mxu0 %v223
    %299 = vmatprep.subr.bf16.mxu0 0
    %300 = vmatpush1.bf16.msra.mxu0 %v224
    %301 = vmatprep.subr.bf16.mxu0 0
    %302 = vmatpush1.bf16.msra.mxu0 %v225
    %303 = vmatprep.subr.bf16.mxu0 0
    %304 = vmatpush1.bf16.msra.mxu0 %v226
    %305 = vmatprep.subr.bf16.mxu0 0
    %306 = vmatpush1.bf16.msra.mxu0 %v227
    %307 = vmatprep.subr.bf16.mxu0 0
    %308 = vmatpush1.bf16.msra.mxu0 %v228
    %309 = vmatprep.subr.bf16.mxu0 0
    %310 = vmatpush1.bf16.msra.mxu0 0
    %311 = vmatprep.subr.bf16.mxu0 0
    %312 = vmatpush1.bf16.msra.mxu0 0
    %313 = vmatprep.subr.bf16.mxu0 0
    %314 = vmatpush1.bf16.msra.mxu0 0
    %315 = vmatprep.subr.bf16.mxu0 0
    %316 = vmatpush1.bf16.msra.mxu0 0
    %317 = vmatprep.subr.bf16.mxu0 0
    %318 = vmatpush1.bf16.msra.mxu0 0
    %319 = vmatprep.subr.bf16.mxu0 0
    %320 = vmatpush1.bf16.msra.mxu0 0
    %321 = vmatprep.subr.bf16.mxu0 0
    %322 = vmatpush1.bf16.msra.mxu0 0
    %323 = vmatprep.subr.bf16.mxu0 0
    %324 = vmatpush1.bf16.msra.mxu0 0
    %325 = vmatprep.mubr.bf16.mxu0 0
    %326 = vmatmul.mubr.bf16.gmra.mrb[0].mxu0 %v105
    %v327 = vpop.f32.mrb[0].mxu0
    %v328 = vadd.f32 %v288, %v327
    %v329 = vpop.f32.mrb[0].mxu0
    %v330 = vpop.f32.mrb[0].mxu0
    %v331 = vpop.f32.mrb[0].mxu0
    %332 = vdwg.mxu0
    %v333 = vmax.f32 %v328, 0.0
    %v334 = vpack.c.bf16 %v333, %v333
    %v335 = vld [vmem:[%s3] sm:$0xf]
    %v336 = vld [vmem:[%s3 + $0x4] sm:$0xf]
    %v337 = vld [vmem:[%s3 + $0x8] sm:$0xf]
    %v338 = vld [vmem:[%s3 + $0xc] sm:$0xf]
    %v339 = vld [vmem:[%s3 + $0x10] sm:$0xf]
    %v340 = vld [vmem:[%s3 + $0x14] sm:$0xf]
    %v341 = vld [vmem:[%s3 + $0x18] sm:$0xf]
    %v342 = vld [vmem:[%s3 + $0x1c] sm:$0xf]
    %v343 = vld [vmem:[%s3 + $0x20] sm:$0xf]
    %v344 = vld [vmem:[%s3 + $0x24] sm:$0xf]
    %v345 = vld [vmem:[%s3 + $0x28] sm:$0xf]
    %v346 = vld [vmem:[%s3 + $0x2c] sm:$0xf]
    %v347 = vld [vmem:[%s3 + $0x30] sm:$0xf]
    %v348 = vld [vmem:[%s3 + $0x34] sm:$0xf]
    %v349 = vld [vmem:[%s3 + $0x38] sm:$0xf]
    %v350 = vld [vmem:[%s3 + $0x3c] sm:$0xf]
    %v351 = vld [vmem:[%s4] sm:$0x1]
    %v353 = vlaneseq
    %v354 = vshrl.u32 %v353, 7
    %v355 = vsub.s32 0, %v354
    %v356 = vrot.slane %v351, %v355
    %v374 = vunpack.c.l.b16 %v335
    %v375 = vunpack.c.l.b16 %v336
    %v376 = vunpack.c.l.b16 %v337
    %v377 = vunpack.c.l.b16 %v338
    %v378 = vunpack.c.l.b16 %v339
    %v379 = vunpack.c.l.b16 %v340
    %v380 = vunpack.c.l.b16 %v341
    %v381 = vunpack.c.l.b16 %v342
    %v382 = vunpack.c.l.b16 %v343
    %v383 = vunpack.c.l.b16 %v344
    %v384 = vunpack.c.l.b16 %v345
    %v385 = vunpack.c.l.b16 %v346
    %v386 = vunpack.c.l.b16 %v347
    %v387 = vunpack.c.l.b16 %v348
    %v388 = vunpack.c.l.b16 %v349
    %v389 = vunpack.c.l.b16 %v350
    %v390 = vpack.c.b16 %v375, %v374
    %v391 = vpack.c.b16 %v377, %v376
    %v392 = vpack.c.b16 %v379, %v378
    %v393 = vpack.c.b16 %v381, %v380
    %v394 = vpack.c.b16 %v383, %v382
    %v395 = vpack.c.b16 %v385, %v384
    %v396 = vpack.c.b16 %v387, %v386
    %v397 = vpack.c.b16 %v389, %v388
    %406 = vmatprep.subr.bf16.mxu0 0
    %407 = vmatpush1.bf16.msra.mxu0 %v390
    %408 = vmatprep.subr.bf16.mxu0 0
    %409 = vmatpush1.bf16.msra.mxu0 %v391
    %410 = vmatprep.subr.bf16.mxu0 0
    %411 = vmatpush1.bf16.msra.mxu0 %v392
    %412 = vmatprep.subr.bf16.mxu0 0
    %413 = vmatpush1.bf16.msra.mxu0 %v393
    %414 = vmatprep.subr.bf16.mxu0 0
    %415 = vmatpush1.bf16.msra.mxu0 %v394
    %416 = vmatprep.subr.bf16.mxu0 0
    %417 = vmatpush1.bf16.msra.mxu0 %v395
    %418 = vmatprep.subr.bf16.mxu0 0
    %419 = vmatpush1.bf16.msra.mxu0 %v396
    %420 = vmatprep.subr.bf16.mxu0 0
    %421 = vmatpush1.bf16.msra.mxu0 %v397
    %422 = vmatprep.subr.bf16.mxu0 0
    %423 = vmatpush1.bf16.msra.mxu0 0
    %424 = vmatprep.subr.bf16.mxu0 0
    %425 = vmatpush1.bf16.msra.mxu0 0
    %426 = vmatprep.subr.bf16.mxu0 0
    %427 = vmatpush1.bf16.msra.mxu0 0
    %428 = vmatprep.subr.bf16.mxu0 0
    %429 = vmatpush1.bf16.msra.mxu0 0
    %430 = vmatprep.subr.bf16.mxu0 0
    %431 = vmatpush1.bf16.msra.mxu0 0
    %432 = vmatprep.subr.bf16.mxu0 0
    %433 = vmatpush1.bf16.msra.mxu0 0
    %434 = vmatprep.subr.bf16.mxu0 0
    %435 = vmatpush1.bf16.msra.mxu0 0
    %436 = vmatprep.subr.bf16.mxu0 0
    %437 = vmatpush1.bf16.msra.mxu0 0
    %438 = vmatprep.mubr.bf16.mxu0 0
    %439 = vmatmul.mubr.bf16.gmra.mrb[0].mxu0 %v334
    %v440 = vpop.f32.mrb[0].mxu0
    %v441 = vadd.f32 %v356, %v440
    %v442 = vpop.f32.mrb[0].mxu0
    %v443 = vpop.f32.mrb[0].mxu0
    %v444 = vpop.f32.mrb[0].mxu0
    %445 = vdwg.mxu0
    %v446 = vmax.f32 %v441, 0.0
    %v447 = vpack.c.bf16 %v446, %v446
    %v448 = vld [vmem:[%s5] sm:$0xf]
    %v449 = vld [vmem:[%s5 + $0x4] sm:$0xf]
    %v450 = vld [vmem:[%s5 + $0x8] sm:$0xf]
    %v451 = vld [vmem:[%s5 + $0xc] sm:$0xf]
    %v452 = vld [vmem:[%s5 + $0x10] sm:$0xf]
    %v453 = vld [vmem:[%s5 + $0x14] sm:$0xf]
    %v454 = vld [vmem:[%s5 + $0x18] sm:$0xf]
    %v455 = vld [vmem:[%s5 + $0x1c] sm:$0xf]
    %v456 = vld [vmem:[%s5 + $0x20] sm:$0xf]
    %v457 = vld [vmem:[%s5 + $0x24] sm:$0xf]
    %v458 = vld [vmem:[%s5 + $0x28] sm:$0xf]
    %v459 = vld [vmem:[%s5 + $0x2c] sm:$0xf]
    %v460 = vld [vmem:[%s5 + $0x30] sm:$0xf]
    %v461 = vld [vmem:[%s5 + $0x34] sm:$0xf]
    %v462 = vld [vmem:[%s5 + $0x38] sm:$0xf]
    %v463 = vld [vmem:[%s5 + $0x3c] sm:$0xf]
    %v464 = vld [vmem:[%s6] sm:$0x1]
    %v466 = vlaneseq
    %v467 = vshrl.u32 %v466, 7
    %v468 = vsub.s32 0, %v467
    %v469 = vrot.slane %v464, %v468
    %v487 = vunpack.c.l.b16 %v448
    %v488 = vunpack.c.l.b16 %v449
    %v489 = vunpack.c.l.b16 %v450
    %v490 = vunpack.c.l.b16 %v451
    %v491 = vunpack.c.l.b16 %v452
    %v492 = vunpack.c.l.b16 %v453
    %v493 = vunpack.c.l.b16 %v454
    %v494 = vunpack.c.l.b16 %v455
    %v495 = vunpack.c.l.b16 %v456
    %v496 = vunpack.c.l.b16 %v457
    %v497 = vunpack.c.l.b16 %v458
    %v498 = vunpack.c.l.b16 %v459
    %v499 = vunpack.c.l.b16 %v460
    %v500 = vunpack.c.l.b16 %v461
    %v501 = vunpack.c.l.b16 %v462
    %v502 = vunpack.c.l.b16 %v463
    %v503 = vpack.c.b16 %v488, %v487
    %v504 = vpack.c.b16 %v490, %v489
    %v505 = vpack.c.b16 %v492, %v491
    %v506 = vpack.c.b16 %v494, %v493
    %v507 = vpack.c.b16 %v496, %v495
    %v508 = vpack.c.b16 %v498, %v497
    %v509 = vpack.c.b16 %v500, %v499
    %v510 = vpack.c.b16 %v502, %v501
    %519 = vmatprep.subr.bf16.mxu0 0
    %520 = vmatpush1.bf16.msra.mxu0 %v503
    %521 = vmatprep.subr.bf16.mxu0 0
    %522 = vmatpush1.bf16.msra.mxu0 %v504
    %523 = vmatprep.subr.bf16.mxu0 0
    %524 = vmatpush1.bf16.msra.mxu0 %v505
    %525 = vmatprep.subr.bf16.mxu0 0
    %526 = vmatpush1.bf16.msra.mxu0 %v506
    %527 = vmatprep.subr.bf16.mxu0 0
    %528 = vmatpush1.bf16.msra.mxu0 %v507
    %529 = vmatprep.subr.bf16.mxu0 0
    %530 = vmatpush1.bf16.msra.mxu0 %v508
    %531 = vmatprep.subr.bf16.mxu0 0
    %532 = vmatpush1.bf16.msra.mxu0 %v509
    %533 = vmatprep.subr.bf16.mxu0 0
    %534 = vmatpush1.bf16.msra.mxu0 %v510
    %535 = vmatprep.subr.bf16.mxu0 0
    %536 = vmatpush1.bf16.msra.mxu0 0
    %537 = vmatprep.subr.bf16.mxu0 0
    %538 = vmatpush1.bf16.msra.mxu0 0
    %539 = vmatprep.subr.bf16.mxu0 0
    %540 = vmatpush1.bf16.msra.mxu0 0
    %541 = vmatprep.subr.bf16.mxu0 0
    %542 = vmatpush1.bf16.msra.mxu0 0
    %543 = vmatprep.subr.bf16.mxu0 0
    %544 = vmatpush1.bf16.msra.mxu0 0
    %545 = vmatprep.subr.bf16.mxu0 0
    %546 = vmatpush1.bf16.msra.mxu0 0
    %547 = vmatprep.subr.bf16.mxu0 0
    %548 = vmatpush1.bf16.msra.mxu0 0
    %549 = vmatprep.subr.bf16.mxu0 0
    %550 = vmatpush1.bf16.msra.mxu0 0
    %551 = vmatprep.mubr.bf16.mxu0 0
    %552 = vmatmul.mubr.bf16.gmra.mrb[0].mxu0 %v447
    %v553 = vpop.f32.mrb[0].mxu0
    %v554 = vadd.f32 %v469, %v553
    %v555 = vpop.f32.mrb[0].mxu0
    %v556 = vpop.f32.mrb[0].mxu0
    %v557 = vpop.f32.mrb[0].mxu0
    %558 = vdwg.mxu0
    %vm559 = vcmask 15360
    %560 = vst.msk [vmem:[%s7] sm:$0xff] %vm559, %v554
    // Predicated region
    $region34: #{peng_player_forward.1} parent=1 // pred_check
      _
    $region35: #{peng_player_forward.1} parent=1 // pred_check_branch
      %562 = sbr.rel (0) target = $region37
    $region36: #{peng_player_forward.1} parent=1 // pred_region
      _
    $region37: #{peng_player_forward.1} parent=1 // pred_fallthru
      _
    // Predicated region
    $region38: #{peng_player_forward.1} parent=1 // pred_check
      _
    $region39: #{peng_player_forward.1} parent=1 // pred_check_branch
      %564 = sbr.rel (0) target = $region41
    $region40: #{peng_player_forward.1} parent=1 // pred_region
      _
    $region41: #{peng_player_forward.1} parent=1 // pred_fallthru
      _
    %565 = vsyncpa [#allocation3], 1

</llo_original>
